<compile_context>
chip_gen: v6e
topology: v6e:2x2x1
jax: 0.10.0
libtpu: 0.0.40
codegen_flags: <defaults>
</compile_context>

<pallas_src>
import math

import jax
import jax.numpy as jnp
from jax.experimental import pallas as pl
from jax.experimental.pallas import tpu as pltpu


# ----------------------------------------------------------------------------
# Kernel
# ----------------------------------------------------------------------------
def gate_kernel(x_ref, g_ref, o_ref):
    # x_ref: (TB, TF) tile, g_ref: (1, TF) fused gate (weight * binary mask)
    o_ref[...] = x_ref[...] * g_ref[...]   # (1, TF) broadcasts over batch rows


# ----------------------------------------------------------------------------
# Generation-aware configuration
# ----------------------------------------------------------------------------
_MIN_PALLAS_ELEMS = 64 * 1024          # below this, plain XLA is faster


def _tpu_generation():
    try:
        kind = jax.devices()[0].device_kind.lower()
    except Exception:
        return None
    for gen in ("v7", "v6", "v5"):
        if gen in kind:
            return gen
    return None


def _gen_config():
    gen = _tpu_generation()
    if gen == "v7":
        # 4 * 6 MiB double-buffered in/out = 24 MiB << 40 MiB limit (64 MiB phys)
        return dict(target_bytes=6 << 20, vmem_limit=40 << 20, core_parallel=True)
    if gen == "v6":
        # 4 * 4 MiB = 16 MiB fits the 32 MiB scoped default
        return dict(target_bytes=4 << 20, vmem_limit=32 << 20, core_parallel=False)
    # v5e / unknown: conservative, stay inside 16 MiB scoped default
    return dict(target_bytes=2 << 20, vmem_limit=None, core_parallel=False)


def _choose_tile(B, F, itemsize, target_bytes):
    """Pick (tile_rows, tile_feats): lane-dense TF, sublane-aligned TB,
    TB*TF*itemsize ~= target_bytes."""
    min_rows = max(8, 32 // itemsize)        # 8 for f32, 16 for bf16, 32 for int8
    # Feature tile: whole F if even the thinnest row-slab fits, else the
    # largest multiple of 128 that fits min_rows rows in the budget.
    if F * min_rows * itemsize <= target_bytes:
        tf = F
    else:
        tf = max(128, ((target_bytes // (min_rows * itemsize)) // 128) * 128)
        tf = min(tf, F)
    rows = target_bytes // max(1, tf * itemsize)
    rows = max(min_rows, (rows // min_rows) * min_rows)
    if rows >= B:
        rows = B                              # full-extent block (always legal)
    return rows, tf


# ----------------------------------------------------------------------------
# Pallas dispatch
# ----------------------------------------------------------------------------
def _pallas_gate(x, gate2d, tile=None):
    B, F = x.shape
    cfg = _gen_config()
    itemsize = jnp.dtype(x.dtype).itemsize

    if tile is None:
        tb, tf = _choose_tile(B, F, itemsize, cfg["target_bytes"])
    else:
        tb, tf = tile
        tb = min(tb, B)
        tf = min(tf, F)

    grid = (pl.cdiv(B, tb), pl.cdiv(F, tf))

    # Only CORE_PARALLEL (on v7x) actually shards grid axes across the two
    # TensorCores; the plain "parallel" string does not change codegen.
    if cfg["core_parallel"] and grid[0] >= 2 and grid[0] % 2 == 0:
        dims = (pltpu.CORE_PARALLEL, pltpu.ARBITRARY)
    else:
        dims = ("parallel", "arbitrary")

    cp_kwargs = dict(dimension_semantics=dims)
    if cfg["vmem_limit"] is not None:
        cp_kwargs["vmem_limit_bytes"] = cfg["vmem_limit"]

    return pl.pallas_call(
        gate_kernel,
        out_shape=jax.ShapeDtypeStruct((B, F), x.dtype),
        grid_spec=pltpu.PrefetchScalarGridSpec(
            num_scalar_prefetch=0,
            grid=grid,
            in_specs=[
                # x: tiled along batch and feature (lane-dense TF).
                pl.BlockSpec((tb, tf), lambda i, j: (i, j)),
                # fused gate row: independent of batch-grid index -> not
                # re-fetched per batch tile, only per feature tile.
                pl.BlockSpec((1, tf), lambda i, j: (0, j)),
            ],
            out_specs=pl.BlockSpec((tb, tf), lambda i, j: (i, j)),
        ),
        compiler_params=pltpu.CompilerParams(**cp_kwargs),
    )(x, gate2d)


def gate_layer_forward(x, weight, binary_layer, *, force_pallas=False, tile=None):
    """x: (B, F), weight: (1, F), binary_layer: (F,). Returns x * weight * mask."""
    B, F = x.shape
    # Fuse the {0,1} mask into the weight once (O(F), bit-exact).
    gate = (weight.reshape(1, F) * binary_layer.reshape(1, F)).astype(x.dtype)

    lane_dense = (F % 128 == 0)
    if not force_pallas and (B * F < _MIN_PALLAS_ELEMS or not lane_dense):
        # Tiny or non-lane-dense problem: masked partial stores / launch
        # overhead dominate; let XLA fuse the multiply.
        return x * gate

    if not lane_dense:
        # Forced Pallas path with ragged F: zero-pad the feature axis to a
        # multiple of 128 (padded outputs are 0 and sliced off).
        f_pad = ((F + 127) // 128) * 128
        x_p = jnp.pad(x, ((0, 0), (0, f_pad - F)))
        g_p = jnp.pad(gate, ((0, 0), (0, f_pad - F)))
        return _pallas_gate(x_p, g_p, tile)[:, :F]

    return _pallas_gate(x, gate, tile)


# ----------------------------------------------------------------------------
# Parameter init (matches torch: nn.init.kaiming_uniform_ with default a=0)
# ----------------------------------------------------------------------------
def init_gate_params(key, in_shape):
    fan_in = in_shape
    gain = math.sqrt(2.0)                       # kaiming_uniform_ default a=0
    bound = gain * math.sqrt(3.0 / fan_in)      # = sqrt(6 / fan_in)
    weight = jax.random.uniform(
        key, (1, in_shape), dtype=jnp.float32, minval=-bound, maxval=bound
    )
    binary_layer = jnp.ones((in_shape,), dtype=jnp.float32)
    return weight, binary_layer


# TODO(synk): set_binary_layer (quantile thresholding) and save_gate_weights
# (csv export) are host-side parameter utilities, not part of the forward
# pass, so they are intentionally not implemented as kernels.


if __name__ == "__main__":
    key = jax.random.PRNGKey(0)
    k_x1, k_w1, k_x2, k_w2, k_x3, k_w3, k_x4, k_w4 = jax.random.split(key, 8)

    # --- Test 1: module-natural tiny shape (F not lane-dense) -> XLA fallback.
    B1, F1 = 2, 32
    x1 = jax.random.normal(k_x1, (B1, F1), dtype=jnp.float32)
    w1, m1 = init_gate_params(k_w1, F1)
    out1 = jax.block_until_ready(gate_layer_forward(x1, w1, m1))
    assert out1.shape == (B1, F1)
    assert jnp.allclose(out1, x1 * w1 * m1, atol=1e-6, rtol=1e-6)

    # --- Test 2: small lane-dense shape forced through the Pallas kernel.
    B2, F2 = 8, 128
    x2 = jax.random.normal(k_x2, (B2, F2), dtype=jnp.float32)
    w2, m2 = init_gate_params(k_w2, F2)
    out2 = jax.block_until_ready(gate_layer_forward(x2, w2, m2, force_pallas=True))
    assert out2.shape == (B2, F2)
    assert jnp.allclose(out2, x2 * w2 * m2, atol=1e-6, rtol=1e-6)

    # --- Test 3: forced Pallas path with ragged F (exercises feature padding).
    B3, F3 = 4, 96
    x3 = jax.random.normal(k_x3, (B3, F3), dtype=jnp.float32)
    w3, m3 = init_gate_params(k_w3, F3)
    out3 = jax.block_until_ready(gate_layer_forward(x3, w3, m3, force_pallas=True))
    assert out3.shape == (B3, F3)
    assert jnp.allclose(out3, x3 * w3 * m3, atol=1e-6, rtol=1e-6)

    # --- Test 4: larger shape exercising the 2-D tiled / pipelined path
    #     (grid = (4, 2) batch x feature tiles).
    B4, F4 = 512, 256
    x4 = jax.random.normal(k_x4, (B4, F4), dtype=jnp.float32)
    w4, m4 = init_gate_params(k_w4, F4)
    out4 = jax.block_until_ready(
        gate_layer_forward(x4, w4, m4, force_pallas=True, tile=(128, 128))
    )
    assert out4.shape == (B4, F4)
    assert jnp.allclose(out4, x4 * w4 * m4, atol=1e-6, rtol=1e-6)

    # --- Test 5: auto tile selection on the same large shape (single check of
    #     the generation-aware path).
    out5 = jax.block_until_ready(gate_layer_forward(x4, w4, m4, force_pallas=True))
    assert jnp.allclose(out5, x4 * w4 * m4, atol=1e-6, rtol=1e-6)

    print("KERNEL_OK")
</pallas_src>

<mosaic_0001>
module attributes {stable_mosaic.version = 11 : i64} {
  func.func @gate_kernel(%arg0: i32, %arg1: i32, %arg2: memref<8x128xf32, #tpu.memory_space<vmem>>, %arg3: memref<1x128xf32, #tpu.memory_space<vmem>>, %arg4: memref<8x128xf32, #tpu.memory_space<vmem>>) attributes {dimension_semantics = [#tpu.dimension_semantics<parallel>, #tpu.dimension_semantics<arbitrary>], iteration_bounds = array<i64: 1, 1>, scalar_prefetch = 0 : i64, scratch_operands = 0 : i64, tpu.core_type = #tpu.core_type<tc>, window_params = [{transform_indices = @transform_0, window_bounds = array<i64: 8, 128>}, {transform_indices = @transform_1, window_bounds = array<i64: 1, 128>}, {transform_indices = @transform_2, window_bounds = array<i64: 8, 128>}]} {
    %c0 = arith.constant 0 : index
    %c0_0 = arith.constant 0 : index
    %0 = vector.load %arg2[%c0, %c0_0] : memref<8x128xf32, #tpu.memory_space<vmem>>, vector<8x128xf32>
    %c0_1 = arith.constant 0 : index
    %c0_2 = arith.constant 0 : index
    %1 = vector.load %arg3[%c0_1, %c0_2] : memref<1x128xf32, #tpu.memory_space<vmem>>, vector<1x128xf32>
    %2 = vector.broadcast %1 : vector<1x128xf32> to vector<8x128xf32>
    %3 = arith.mulf %0, %2 : vector<8x128xf32>
    %c0_3 = arith.constant 0 : index
    %c0_4 = arith.constant 0 : index
    %4 = vector.load %arg4[%c0_3, %c0_4] : memref<8x128xf32, #tpu.memory_space<vmem>>, vector<8x128xf32>
    tpu.vector_store %arg4[%c0_3, %c0_4], %3 {strides = array<i32>} : memref<8x128xf32, #tpu.memory_space<vmem>>, vector<8x128xf32>,
    return
  }
  func.func @transform_0(%arg0: i32, %arg1: i32) -> (i32, i32) {
    %c0_i32 = arith.constant 0 : i32
    return %arg0, %arg1 : i32, i32
  }
  func.func @transform_1(%arg0: i32, %arg1: i32) -> (i32, i32) {
    %c0_i32 = arith.constant 0 : i32
    %c0_i32_0 = arith.constant 0 : i32
    return %c0_i32, %arg1 : i32, i32
  }
  func.func @transform_2(%arg0: i32, %arg1: i32) -> (i32, i32) {
    %c0_i32 = arith.constant 0 : i32
    return %arg0, %arg1 : i32, i32
  }
}

</mosaic_0001>

<llo_original>
// kernel: tpu_custom_call.1
$region0: #{tpu_custom_call.1}
  #allocation0 [shape = 'u32[]', space=smem, size = 0x4, offset = 0x4, fixed_abs, tag = 'smem constant byte address 0x4 - core index']
  #allocation1 [shape = 'u32[144,128]{1,0:T(1,128)}', space=vmem, size = 0x12000, scoped, tag = 'internal scratch']
  %s0 = inlined_call_operand.hbm [shape: f32[8,128], index: 0, kind: input, shape index: {}]
  %s1 = inlined_call_operand.vmem [shape: f32[1,128], index: 1, kind: input, shape index: {}]
  %s2 = inlined_call_operand.hbm [shape: f32[8,128], index: 2, kind: output, shape index: {}]
  %s3 = sld [smem:[#allocation0]]
  $region22: #{tpu_custom_call.1} parent=0
    _
  %s5 = ssub.s32 1, %s3
  %s6 = scalar_select 0, %s5, %s3
  $region1: #{tpu_custom_call.1} parent=0
    #allocation2 [shape = 'u8[4096]{0}', space=vmem, size = 0x1000, scoped, tag = 'input window, operand 0, single buffered']
    #allocation3 [shape = 's32[1]{0}', space=sflag, size = 0x4, scoped, tag = 'scoped memory for tpu_custom_call.1']
    #allocation4 [shape = 's32[1]{0}', space=sflag, size = 0x4, scoped, tag = 'scoped memory for tpu_custom_call.1']
    #allocation5 [shape = 'u8[4096]{0}', space=vmem, size = 0x1000, scoped, tag = 'output window, operand 0, single buffered']
    %7 = vsyncpa [#allocation3], 0
    %8 = vsyncpa [#allocation4], 0
    // Predicated region
    $region2: #{tpu_custom_call.1} parent=1 // pred_check
      _
    $region3: #{tpu_custom_call.1} parent=1 // pred_check_branch
      %10 = sbr.rel (0) target = $region5
    $region4: #{tpu_custom_call.1} parent=1 // pred_region
      %s12 = ssub.s32 128, 128
      %13 = vsyncadd [#allocation3], %s12
      %s15 = sshll.u32 [#allocation2], 4
      %s16 = int_to_ptr.vmem [resolvable:$true] %s15
      %18 = dma.hbm_to_vmem [thread:$0]  %s0, 128, %s16, [#allocation3]
    $region5: #{tpu_custom_call.1} parent=1 // pred_fallthru
      _
    // Predicated region
    $region6: #{tpu_custom_call.1} parent=1 // pred_check
      _
    $region7: #{tpu_custom_call.1} parent=1 // pred_check_branch
      %20 = sbr.rel (0) target = $region9
    $region8: #{tpu_custom_call.1} parent=1 // pred_region
      _
    $region9: #{tpu_custom_call.1} parent=1 // pred_fallthru
      _
    // Predicated region
    $region10: #{tpu_custom_call.1} parent=1 // pred_check
      _
    $region11: #{tpu_custom_call.1} parent=1 // pred_check_branch
      %22 = sbr.rel (0) target = $region13
    $region12: #{tpu_custom_call.1} parent=1 // pred_region
      %23 = dma.done [#allocation3], 128
    $region13: #{tpu_custom_call.1} parent=1 // pred_fallthru
      _
    %v24 = vld [vmem:[#allocation2] sm:$0xff]
    %v25 = vld [vmem:[%s1] sm:$0x1]
    %v27 = vlaneseq
    %v28 = vshrl.u32 %v27, 7
    %v29 = vsub.s32 0, %v28
    %v30 = vrot.slane %v25, %v29
    %v32 = vmul.f32 %v24, %v30
    %33 = vst [vmem:[#allocation5] sm:$0xff] %v32
    // Predicated region
    $region14: #{tpu_custom_call.1} parent=1 // pred_check
      _
    $region15: #{tpu_custom_call.1} parent=1 // pred_check_branch
      %35 = sbr.rel (0) target = $region17
    $region16: #{tpu_custom_call.1} parent=1 // pred_region
      %s37 = ssub.s32 128, 128
      %38 = vsyncadd [#allocation4], %s37
      %s40 = sshll.u32 [#allocation5], 4
      %s41 = int_to_ptr.vmem [resolvable:$true] %s40
      %43 = dma.vmem_to_hbm [thread:$0]  %s41, 128, %s2, [#allocation4]
    $region17: #{tpu_custom_call.1} parent=1 // pred_fallthru
      _
    // Predicated region
    $region18: #{tpu_custom_call.1} parent=1 // pred_check
      _
    $region19: #{tpu_custom_call.1} parent=1 // pred_check_branch
      %45 = sbr.rel (0) target = $region21
    $region20: #{tpu_custom_call.1} parent=1 // pred_region
      %46 = dma.done [#allocation4], 128
    $region21: #{tpu_custom_call.1} parent=1 // pred_fallthru
      _
    %47 = vsyncpa [#allocation3], 1
    %48 = vsyncpa [#allocation4], 1

</llo_original>
